<compile_context>
chip_gen: v7x
topology: tpu7x:2x2x1
jax: 0.10.0
libtpu: 0.0.40
codegen_flags: <defaults>
</compile_context>

<pallas_src>
import jax
import jax.numpy as jnp
from jax.experimental import pallas as pl
from jax.experimental.pallas import tpu as pltpu

NUM_FEATURES = 37   # dataset.num_features in the reference module
HIDDEN = 32         # hidden_channels
NUM_CLASSES = 3     # Linear(hidden_channels, 3)

F_PAD = 128         # padded feature dim  (lane/sublane aligned)
H_PAD = 128         # padded hidden dim   (lane-dense)
C_PAD = 128         # padded class dim    (lane-dense output store)
ROW_TILE_LARGE = 128
ROW_TILE_SMALL = 16  # multiple of 16 so bf16 sublane packing stays legal


def _round_up(x, m):
    return (x + m - 1) // m * m


def _pad2(a, rows, cols, dtype):
    out = jnp.zeros((rows, cols), dtype)
    return out.at[: a.shape[0], : a.shape[1]].set(a.astype(dtype))


def _conv1_kernel(a_ref, x_ref, w1_ref, b1_ref, h1_ref, xw_ref):
    """H1 row-tile = relu(A_hat[rows, :] @ (X @ W1) + b1).

    a_ref : (TM, Np)  bf16  row tile of A_hat (pipelined over the grid)
    x_ref : (Np, Fp)  bf16  resident
    w1_ref: (Fp, Hp)  bf16  resident
    b1_ref: (1,  Hp)  f32
    h1_ref: (TM, Hp)  bf16  output row tile
    xw_ref: (Np, Hp)  bf16  scratch: X @ W1, computed once on the first tile
    """
    @pl.when(pl.program_id(0) == 0)
    def _():
        xw = jnp.dot(x_ref[...], w1_ref[...],
                     preferred_element_type=jnp.float32)
        xw_ref[...] = xw.astype(jnp.bfloat16)

    h = jnp.dot(a_ref[...], xw_ref[...], preferred_element_type=jnp.float32)
    h = jnp.maximum(h + b1_ref[...], 0.0)          # bias + ReLU in f32
    h1_ref[...] = h.astype(jnp.bfloat16)


def _conv2_head_kernel(a_ref, h1_ref, w2_ref, b2_ref, w3_ref, b3_ref,
                       o_ref, hw_ref):
    """out row-tile = softmax(relu(A_hat[rows,:] @ (H1 @ W2) + b2) @ W3 + b3)."""
    @pl.when(pl.program_id(0) == 0)
    def _():
        hw = jnp.dot(h1_ref[...], w2_ref[...],
                     preferred_element_type=jnp.float32)
        hw_ref[...] = hw.astype(jnp.bfloat16)

    h2 = jnp.dot(a_ref[...], hw_ref[...], preferred_element_type=jnp.float32)
    h2 = jnp.maximum(h2 + b2_ref[...], 0.0)        # f32 elementwise

    logits = jnp.dot(h2.astype(jnp.bfloat16), w3_ref[...],
                     preferred_element_type=jnp.float32) + b3_ref[...]

    # Mask padded class lanes so they don't contribute to the softmax.
    col = jax.lax.broadcasted_iota(jnp.int32, logits.shape, 1)
    logits = jnp.where(col < NUM_CLASSES, logits, -1e30)

    m = jnp.max(logits, axis=-1, keepdims=True)
    e = jnp.exp(logits - m)
    denom = jnp.sum(e, axis=-1, keepdims=True)
    o_ref[...] = e * pl.reciprocal(denom, approx=True)   # divide on the EUP


@jax.jit
def gcn_forward(a_hat, x, w1, b1, w2, b2, w3, b3):
    n = x.shape[0]
    tm = ROW_TILE_LARGE if n >= ROW_TILE_LARGE else ROW_TILE_SMALL
    n_pad = _round_up(n, tm)
    grid = (n_pad // tm,)

    # Zero-padding is mathematically exact for the real block; cast MXU
    # operands to bf16, keep biases f32.
    a_p = _pad2(a_hat, n_pad, n_pad, jnp.bfloat16)
    x_p = _pad2(x, n_pad, F_PAD, jnp.bfloat16)
    w1_p = _pad2(w1, F_PAD, H_PAD, jnp.bfloat16)
    w2_p = _pad2(w2, H_PAD, H_PAD, jnp.bfloat16)
    w3_p = _pad2(w3, H_PAD, C_PAD, jnp.bfloat16)
    b1_p = _pad2(b1, 1, H_PAD, jnp.float32)
    b2_p = _pad2(b2, 1, H_PAD, jnp.float32)
    b3_p = _pad2(b3, 1, C_PAD, jnp.float32)

    # Scoped-VMEM budget: double-buffered bf16 A row tiles + resident
    # X / H1 / XW scratch / weights; capped at 64 MiB so the same number is
    # legal on v7x's smaller VMEM (shrink the row tile for larger graphs).
    need = (2 * 2 * tm * n_pad * 2
            + 2 * n_pad * (F_PAD + 3 * H_PAD)
            + (4 << 20))
    cparams = pltpu.CompilerParams(
        # "arbitrary": the pl.when(i==0) scratch init must run on the core that
        # consumes it.  For v7x dual-TC parallelism, hoist the X@W1 / H1@W2
        # projections into their own call and mark this axis "parallel".
        dimension_semantics=("arbitrary",),
        vmem_limit_bytes=int(min(64 << 20, max(32 << 20, need))),
    )

    row_a_spec = pl.BlockSpec((tm, n_pad), lambda i: (i, 0))

    # --- GCNConv 1 ---
    h1 = pl.pallas_call(
        _conv1_kernel,
        out_shape=jax.ShapeDtypeStruct((n_pad, H_PAD), jnp.bfloat16),
        grid_spec=pltpu.PrefetchScalarGridSpec(
            num_scalar_prefetch=0,
            grid=grid,
            in_specs=[
                row_a_spec,                                     # A_hat row tile
                pl.BlockSpec((n_pad, F_PAD), lambda i: (0, 0)),  # X (resident)
                pl.BlockSpec((F_PAD, H_PAD), lambda i: (0, 0)),  # W1
                pl.BlockSpec((1, H_PAD), lambda i: (0, 0)),      # b1
            ],
            out_specs=pl.BlockSpec((tm, H_PAD), lambda i: (i, 0)),
            scratch_shapes=[pltpu.VMEM((n_pad, H_PAD), jnp.bfloat16)],
        ),
        compiler_params=cparams,
    )(a_p, x_p, w1_p, b1_p)

    # --- GCNConv 2 + Linear + softmax ---
    probs = pl.pallas_call(
        _conv2_head_kernel,
        out_shape=jax.ShapeDtypeStruct((n_pad, C_PAD), jnp.float32),
        grid_spec=pltpu.PrefetchScalarGridSpec(
            num_scalar_prefetch=0,
            grid=grid,
            in_specs=[
                row_a_spec,                                      # A_hat row tile
                pl.BlockSpec((n_pad, H_PAD), lambda i: (0, 0)),  # H1 (resident)
                pl.BlockSpec((H_PAD, H_PAD), lambda i: (0, 0)),  # W2
                pl.BlockSpec((1, H_PAD), lambda i: (0, 0)),      # b2
                pl.BlockSpec((H_PAD, C_PAD), lambda i: (0, 0)),  # W3 (transposed)
                pl.BlockSpec((1, C_PAD), lambda i: (0, 0)),      # b3
            ],
            out_specs=pl.BlockSpec((tm, C_PAD), lambda i: (i, 0)),
            scratch_shapes=[pltpu.VMEM((n_pad, H_PAD), jnp.bfloat16)],
        ),
        compiler_params=cparams,
    )(a_p, h1, w2_p, b2_p, w3_p, b3_p)

    # Lane-dense kernel output -> real (N, 3) probabilities.
    return probs[:n, :NUM_CLASSES]


def build_normalized_adjacency(edge_index, num_nodes):
    """Dense D^{-1/2}(A+I)D^{-1/2} with A[dst, src] = 1 (PyG gcn_norm)."""
    src, dst = edge_index[0], edge_index[1]
    a = jnp.zeros((num_nodes, num_nodes), jnp.float32)
    a = a.at[dst, src].add(1.0)
    a = a + jnp.eye(num_nodes, dtype=jnp.float32)          # self loops
    deg = jnp.sum(a, axis=1)
    dinv = jnp.where(deg > 0, jax.lax.rsqrt(deg), 0.0)
    return dinv[:, None] * a * dinv[None, :]


def init_params(key):
    k1, k2, k3, k4 = jax.random.split(key, 4)
    w1 = jax.random.normal(k1, (NUM_FEATURES, HIDDEN), jnp.float32) * (
        1.0 / jnp.sqrt(NUM_FEATURES))
    b1 = jnp.zeros((1, HIDDEN), jnp.float32)
    w2 = jax.random.normal(k2, (HIDDEN, HIDDEN), jnp.float32) * (
        1.0 / jnp.sqrt(HIDDEN))
    b2 = jnp.zeros((1, HIDDEN), jnp.float32)
    bound = 1.0 / jnp.sqrt(HIDDEN)
    w3 = jax.random.uniform(k3, (HIDDEN, NUM_CLASSES), jnp.float32,
                            minval=-bound, maxval=bound)
    b3 = jax.random.uniform(k4, (1, NUM_CLASSES), jnp.float32,
                            minval=-bound, maxval=bound)
    return w1, b1, w2, b2, w3, b3


def gcn_reference(a_hat, x, w1, b1, w2, b2, w3, b3):
    h1 = jnp.maximum(a_hat @ (x @ w1) + b1, 0.0)
    h2 = jnp.maximum(a_hat @ (h1 @ w2) + b2, 0.0)
    return jax.nn.softmax(h2 @ w3 + b3, axis=-1)


if __name__ == "__main__":
    key = jax.random.PRNGKey(0)
    k_x, k_p = jax.random.split(key)

    num_nodes = 48          # > ROW_TILE_SMALL so the row grid has 3 tiles
    ring = jnp.arange(num_nodes, dtype=jnp.int32)
    nxt = (ring + 1) % num_nodes
    edge_index = jnp.stack(
        [jnp.concatenate([ring, nxt]), jnp.concatenate([nxt, ring])], axis=0)

    x = jax.random.normal(k_x, (num_nodes, NUM_FEATURES), jnp.float32)
    a_hat = build_normalized_adjacency(edge_index, num_nodes)
    params = init_params(k_p)

    out = jax.block_until_ready(gcn_forward(a_hat, x, *params))
    ref = gcn_reference(a_hat, x, *params)

    assert out.shape == (num_nodes, NUM_CLASSES)
    # Rows sum to 1 (softmax, approx-reciprocal tolerance).
    assert bool(jnp.allclose(jnp.sum(out, axis=-1), 1.0, atol=1e-2))
    # Matches the f32 reference within bf16 mixed-precision tolerance.
    assert bool(jnp.allclose(out, ref, atol=5e-2)), float(
        jnp.max(jnp.abs(out - ref)))
    print("KERNEL_OK")
</pallas_src>

<mosaic_0001>
module attributes {stable_mosaic.version = 11 : i64} {
  func.func @_conv1_kernel(%arg0: i32, %arg1: memref<16x48xbf16, #tpu.memory_space<vmem>>, %arg2: memref<48x128xbf16, #tpu.memory_space<vmem>>, %arg3: memref<128x128xbf16, #tpu.memory_space<vmem>>, %arg4: memref<1x128xf32, #tpu.memory_space<vmem>>, %arg5: memref<16x128xbf16, #tpu.memory_space<vmem>>, %arg6: memref<48x128xbf16, #tpu.memory_space<vmem>>) attributes {dimension_semantics = [#tpu.dimension_semantics<arbitrary>], iteration_bounds = array<i64: 3>, scalar_prefetch = 0 : i64, scratch_operands = 1 : i64, tpu.core_type = #tpu.core_type<tc>, window_params = [{transform_indices = @transform_0, window_bounds = array<i64: 16, 48>}, {pipeline_mode = #tpu.pipeline_mode<synchronous>, transform_indices = @transform_1, window_bounds = array<i64: 48, 128>}, {pipeline_mode = #tpu.pipeline_mode<synchronous>, transform_indices = @transform_2, window_bounds = array<i64: 128, 128>}, {pipeline_mode = #tpu.pipeline_mode<synchronous>, transform_indices = @transform_3, window_bounds = array<i64: 1, 128>}, {transform_indices = @transform_4, window_bounds = array<i64: 16, 128>}]} {
    %c0_i32 = arith.constant 0 : i32
    %0 = arith.cmpi eq, %arg0, %c0_i32 : i32
    %1 = arith.extui %0 : i1 to i32
    %c0_i32_0 = arith.constant 0 : i32
    %2 = arith.cmpi ne, %1, %c0_i32_0 : i32
    scf.if %2 {
      %c0_9 = arith.constant 0 : index
      %c0_10 = arith.constant 0 : index
      %13 = vector.load %arg2[%c0_9, %c0_10] : memref<48x128xbf16, #tpu.memory_space<vmem>>, vector<48x128xbf16>
      %c0_11 = arith.constant 0 : index
      %c0_12 = arith.constant 0 : index
      %14 = vector.load %arg3[%c0_11, %c0_12] : memref<128x128xbf16, #tpu.memory_space<vmem>>, vector<128x128xbf16>
      %cst_13 = arith.constant dense<0.000000e+00> : vector<48x128xf32>
      %15 = tpu.matmul %13, %14, %cst_13 {dimension_numbers = #tpu.dot_dimension_numbers<[1], [0], [0], [1], [0, 0, 1, 1], [], []>} : vector<48x128xbf16>, vector<128x128xbf16>, vector<48x128xf32> -> vector<48x128xf32>
      %16 = arith.truncf %15 : vector<48x128xf32> to vector<48x128xbf16>
      %c0_14 = arith.constant 0 : index
      %c0_15 = arith.constant 0 : index
      %17 = vector.load %arg6[%c0_14, %c0_15] : memref<48x128xbf16, #tpu.memory_space<vmem>>, vector<48x128xbf16>
      tpu.vector_store %arg6[%c0_14, %c0_15], %16 {strides = array<i32>} : memref<48x128xbf16, #tpu.memory_space<vmem>>, vector<48x128xbf16>,
    } else {
    }
    %c0 = arith.constant 0 : index
    %c0_1 = arith.constant 0 : index
    %3 = vector.load %arg1[%c0, %c0_1] : memref<16x48xbf16, #tpu.memory_space<vmem>>, vector<16x48xbf16>
    %c0_2 = arith.constant 0 : index
    %c0_3 = arith.constant 0 : index
    %4 = vector.load %arg6[%c0_2, %c0_3] : memref<48x128xbf16, #tpu.memory_space<vmem>>, vector<48x128xbf16>
    %cst = arith.constant dense<0.000000e+00> : vector<16x128xf32>
    %5 = tpu.matmul %3, %4, %cst {dimension_numbers = #tpu.dot_dimension_numbers<[1], [0], [0], [1], [0, 0, 1, 1], [], []>} : vector<16x48xbf16>, vector<48x128xbf16>, vector<16x128xf32> -> vector<16x128xf32>
    %c0_4 = arith.constant 0 : index
    %c0_5 = arith.constant 0 : index
    %6 = vector.load %arg4[%c0_4, %c0_5] : memref<1x128xf32, #tpu.memory_space<vmem>>, vector<1x128xf32>
    %7 = vector.broadcast %6 : vector<1x128xf32> to vector<16x128xf32>
    %8 = arith.addf %5, %7 : vector<16x128xf32>
    %cst_6 = arith.constant 0.000000e+00 : f32
    %9 = vector.broadcast %cst_6 : f32 to vector<16x128xf32>
    %10 = arith.maximumf %8, %9 : vector<16x128xf32>
    %11 = arith.truncf %10 : vector<16x128xf32> to vector<16x128xbf16>
    %c0_7 = arith.constant 0 : index
    %c0_8 = arith.constant 0 : index
    %12 = vector.load %arg5[%c0_7, %c0_8] : memref<16x128xbf16, #tpu.memory_space<vmem>>, vector<16x128xbf16>
    tpu.vector_store %arg5[%c0_7, %c0_8], %11 {strides = array<i32>} : memref<16x128xbf16, #tpu.memory_space<vmem>>, vector<16x128xbf16>,
    return
  }
  func.func @transform_0(%arg0: i32) -> (i32, i32) {
    %c0_i32 = arith.constant 0 : i32
    %c0_i32_0 = arith.constant 0 : i32
    return %arg0, %c0_i32 : i32, i32
  }
  func.func @transform_1(%arg0: i32) -> (i32, i32) {
    %c0_i32 = arith.constant 0 : i32
    %c0_i32_0 = arith.constant 0 : i32
    %c0_i32_1 = arith.constant 0 : i32
    return %c0_i32, %c0_i32_0 : i32, i32
  }
  func.func @transform_2(%arg0: i32) -> (i32, i32) {
    %c0_i32 = arith.constant 0 : i32
    %c0_i32_0 = arith.constant 0 : i32
    %c0_i32_1 = arith.constant 0 : i32
    return %c0_i32, %c0_i32_0 : i32, i32
  }
  func.func @transform_3(%arg0: i32) -> (i32, i32) {
    %c0_i32 = arith.constant 0 : i32
    %c0_i32_0 = arith.constant 0 : i32
    %c0_i32_1 = arith.constant 0 : i32
    return %c0_i32, %c0_i32_0 : i32, i32
  }
  func.func @transform_4(%arg0: i32) -> (i32, i32) {
    %c0_i32 = arith.constant 0 : i32
    %c0_i32_0 = arith.constant 0 : i32
    return %arg0, %c0_i32 : i32, i32
  }
}

module attributes {stable_mosaic.version = 11 : i64} {
  func.func @_conv2_head_kernel(%arg0: i32, %arg1: memref<16x48xbf16, #tpu.memory_space<vmem>>, %arg2: memref<48x128xbf16, #tpu.memory_space<vmem>>, %arg3: memref<128x128xbf16, #tpu.memory_space<vmem>>, %arg4: memref<1x128xf32, #tpu.memory_space<vmem>>, %arg5: memref<128x128xbf16, #tpu.memory_space<vmem>>, %arg6: memref<1x128xf32, #tpu.memory_space<vmem>>, %arg7: memref<16x128xf32, #tpu.memory_space<vmem>>, %arg8: memref<48x128xbf16, #tpu.memory_space<vmem>>) attributes {dimension_semantics = [#tpu.dimension_semantics<arbitrary>], iteration_bounds = array<i64: 3>, scalar_prefetch = 0 : i64, scratch_operands = 1 : i64, tpu.core_type = #tpu.core_type<tc>, window_params = [{transform_indices = @transform_0, window_bounds = array<i64: 16, 48>}, {pipeline_mode = #tpu.pipeline_mode<synchronous>, transform_indices = @transform_1, window_bounds = array<i64: 48, 128>}, {pipeline_mode = #tpu.pipeline_mode<synchronous>, transform_indices = @transform_2, window_bounds = array<i64: 128, 128>}, {pipeline_mode = #tpu.pipeline_mode<synchronous>, transform_indices = @transform_3, window_bounds = array<i64: 1, 128>}, {pipeline_mode = #tpu.pipeline_mode<synchronous>, transform_indices = @transform_4, window_bounds = array<i64: 128, 128>}, {pipeline_mode = #tpu.pipeline_mode<synchronous>, transform_indices = @transform_5, window_bounds = array<i64: 1, 128>}, {transform_indices = @transform_6, window_bounds = array<i64: 16, 128>}]} {
    %c0_i32 = arith.constant 0 : i32
    %0 = arith.cmpi eq, %arg0, %c0_i32 : i32
    %1 = arith.extui %0 : i1 to i32
    %c0_i32_0 = arith.constant 0 : i32
    %2 = arith.cmpi ne, %1, %c0_i32_0 : i32
    scf.if %2 {
      %c0_17 = arith.constant 0 : index
      %c0_18 = arith.constant 0 : index
      %33 = vector.load %arg2[%c0_17, %c0_18] : memref<48x128xbf16, #tpu.memory_space<vmem>>, vector<48x128xbf16>
      %c0_19 = arith.constant 0 : index
      %c0_20 = arith.constant 0 : index
      %34 = vector.load %arg3[%c0_19, %c0_20] : memref<128x128xbf16, #tpu.memory_space<vmem>>, vector<128x128xbf16>
      %cst_21 = arith.constant dense<0.000000e+00> : vector<48x128xf32>
      %35 = tpu.matmul %33, %34, %cst_21 {dimension_numbers = #tpu.dot_dimension_numbers<[1], [0], [0], [1], [0, 0, 1, 1], [], []>} : vector<48x128xbf16>, vector<128x128xbf16>, vector<48x128xf32> -> vector<48x128xf32>
      %36 = arith.truncf %35 : vector<48x128xf32> to vector<48x128xbf16>
      %c0_22 = arith.constant 0 : index
      %c0_23 = arith.constant 0 : index
      %37 = vector.load %arg8[%c0_22, %c0_23] : memref<48x128xbf16, #tpu.memory_space<vmem>>, vector<48x128xbf16>
      tpu.vector_store %arg8[%c0_22, %c0_23], %36 {strides = array<i32>} : memref<48x128xbf16, #tpu.memory_space<vmem>>, vector<48x128xbf16>,
    } else {
    }
    %c0 = arith.constant 0 : index
    %c0_1 = arith.constant 0 : index
    %3 = vector.load %arg1[%c0, %c0_1] : memref<16x48xbf16, #tpu.memory_space<vmem>>, vector<16x48xbf16>
    %c0_2 = arith.constant 0 : index
    %c0_3 = arith.constant 0 : index
    %4 = vector.load %arg8[%c0_2, %c0_3] : memref<48x128xbf16, #tpu.memory_space<vmem>>, vector<48x128xbf16>
    %cst = arith.constant dense<0.000000e+00> : vector<16x128xf32>
    %5 = tpu.matmul %3, %4, %cst {dimension_numbers = #tpu.dot_dimension_numbers<[1], [0], [0], [1], [0, 0, 1, 1], [], []>} : vector<16x48xbf16>, vector<48x128xbf16>, vector<16x128xf32> -> vector<16x128xf32>
    %c0_4 = arith.constant 0 : index
    %c0_5 = arith.constant 0 : index
    %6 = vector.load %arg4[%c0_4, %c0_5] : memref<1x128xf32, #tpu.memory_space<vmem>>, vector<1x128xf32>
    %7 = vector.broadcast %6 : vector<1x128xf32> to vector<16x128xf32>
    %8 = arith.addf %5, %7 : vector<16x128xf32>
    %cst_6 = arith.constant 0.000000e+00 : f32
    %9 = vector.broadcast %cst_6 : f32 to vector<16x128xf32>
    %10 = arith.maximumf %8, %9 : vector<16x128xf32>
    %11 = arith.truncf %10 : vector<16x128xf32> to vector<16x128xbf16>
    %c0_7 = arith.constant 0 : index
    %c0_8 = arith.constant 0 : index
    %12 = vector.load %arg5[%c0_7, %c0_8] : memref<128x128xbf16, #tpu.memory_space<vmem>>, vector<128x128xbf16>
    %cst_9 = arith.constant dense<0.000000e+00> : vector<16x128xf32>
    %13 = tpu.matmul %11, %12, %cst_9 {dimension_numbers = #tpu.dot_dimension_numbers<[1], [0], [0], [1], [0, 0, 1, 1], [], []>} : vector<16x128xbf16>, vector<128x128xbf16>, vector<16x128xf32> -> vector<16x128xf32>
    %c0_10 = arith.constant 0 : index
    %c0_11 = arith.constant 0 : index
    %14 = vector.load %arg6[%c0_10, %c0_11] : memref<1x128xf32, #tpu.memory_space<vmem>>, vector<1x128xf32>
    %15 = vector.broadcast %14 : vector<1x128xf32> to vector<16x128xf32>
    %16 = arith.addf %13, %15 : vector<16x128xf32>
    %17 = tpu.iota {dimensions = array<i32: 1>} : vector<16x128xi32>
    %c3_i32 = arith.constant 3 : i32
    %18 = vector.broadcast %c3_i32 : i32 to vector<16x128xi32>
    %19 = arith.cmpi slt, %17, %18 : vector<16x128xi32>
    %cst_12 = arith.constant -1.000000e+30 : f32
    %20 = vector.broadcast %cst_12 : f32 to vector<16x128xf32>
    %21 = arith.select %19, %16, %20 : vector<16x128xi1>, vector<16x128xf32>
    %cst_13 = arith.constant dense<0xFF800000> : vector<16xf32>
    %22 = vector.multi_reduction <maximumf>, %21, %cst_13 [1] : vector<16x128xf32> to vector<16xf32>
    %23 = vector.shape_cast %22 : vector<16xf32> to vector<16x1xf32>
    %24 = vector.broadcast %23 : vector<16x1xf32> to vector<16x128xf32>
    %25 = arith.subf %21, %24 : vector<16x128xf32>
    %26 = math.exp %25 : vector<16x128xf32>
    %cst_14 = arith.constant dense<0.000000e+00> : vector<16xf32>
    %27 = vector.multi_reduction <add>, %26, %cst_14 [1] : vector<16x128xf32> to vector<16xf32>
    %28 = vector.shape_cast %27 : vector<16xf32> to vector<16x1xf32>
    %29 = tpu.reciprocal %28 {approx = true} : vector<16x1xf32> -> vector<16x1xf32>
    %30 = vector.broadcast %29 : vector<16x1xf32> to vector<16x128xf32>
    %31 = arith.mulf %26, %30 : vector<16x128xf32>
    %c0_15 = arith.constant 0 : index
    %c0_16 = arith.constant 0 : index
    %32 = vector.load %arg7[%c0_15, %c0_16] : memref<16x128xf32, #tpu.memory_space<vmem>>, vector<16x128xf32>
    tpu.vector_store %arg7[%c0_15, %c0_16], %31 {strides = array<i32>} : memref<16x128xf32, #tpu.memory_space<vmem>>, vector<16x128xf32>,
    return
  }
  func.func @transform_0(%arg0: i32) -> (i32, i32) {
    %c0_i32 = arith.constant 0 : i32
    %c0_i32_0 = arith.constant 0 : i32
    return %arg0, %c0_i32 : i32, i32
  }
  func.func @transform_1(%arg0: i32) -> (i32, i32) {
    %c0_i32 = arith.constant 0 : i32
    %c0_i32_0 = arith.constant 0 : i32
    %c0_i32_1 = arith.constant 0 : i32
    return %c0_i32, %c0_i32_0 : i32, i32
  }
  func.func @transform_2(%arg0: i32) -> (i32, i32) {
    %c0_i32 = arith.constant 0 : i32
    %c0_i32_0 = arith.constant 0 : i32
    %c0_i32_1 = arith.constant 0 : i32
    return %c0_i32, %c0_i32_0 : i32, i32
  }
  func.func @transform_3(%arg0: i32) -> (i32, i32) {
    %c0_i32 = arith.constant 0 : i32
    %c0_i32_0 = arith.constant 0 : i32
    %c0_i32_1 = arith.constant 0 : i32
    return %c0_i32, %c0_i32_0 : i32, i32
  }
  func.func @transform_4(%arg0: i32) -> (i32, i32) {
    %c0_i32 = arith.constant 0 : i32
    %c0_i32_0 = arith.constant 0 : i32
    %c0_i32_1 = arith.constant 0 : i32
    return %c0_i32, %c0_i32_0 : i32, i32
  }
  func.func @transform_5(%arg0: i32) -> (i32, i32) {
    %c0_i32 = arith.constant 0 : i32
    %c0_i32_0 = arith.constant 0 : i32
    %c0_i32_1 = arith.constant 0 : i32
    return %c0_i32, %c0_i32_0 : i32, i32
  }
  func.func @transform_6(%arg0: i32) -> (i32, i32) {
    %c0_i32 = arith.constant 0 : i32
    %c0_i32_0 = arith.constant 0 : i32
    return %arg0, %c0_i32 : i32, i32
  }
}

</mosaic_0001>

<llo_original>
// kernel: gcn_forward.3
$region0: #{gcn_forward.3}
  #allocation0 [shape = 'u32[]', space=smem, size = 0x4, offset = 0x4, fixed_abs, tag = 'smem constant byte address 0x4 - core index']
  #allocation1 [shape = 'u32[144,128]{1,0:T(1,128)}', space=vmem, size = 0x12000, scoped, tag = 'internal scratch']
  #allocation2 [shape = 'bf16[48,128]{1,0:T(16,128)(2,1)}', space=vmem, size = 0x3000, scoped, tag = 'scratch operand']
  %s0 = inlined_call_operand.vmem [shape: bf16[48,48], index: 0, kind: input, shape index: {}]
  %s1 = inlined_call_operand.vmem [shape: bf16[48,128], index: 1, kind: input, shape index: {}]
  %s2 = inlined_call_operand.vmem [shape: bf16[128,128], index: 2, kind: input, shape index: {}]
  %s3 = inlined_call_operand.vmem [shape: f32[1,128], index: 3, kind: input, shape index: {}]
  %s4 = inlined_call_operand.vmem [shape: bf16[128,128], index: 4, kind: input, shape index: {}]
  %s5 = inlined_call_operand.vmem [shape: f32[1,128], index: 5, kind: input, shape index: {}]
  %s6 = inlined_call_operand.vmem [shape: f32[48,128], index: 6, kind: output, shape index: {}]
  %s7 = sld [smem:[#allocation0]]
  $region61: #{gcn_forward.3} parent=0
    _
  %s9 = ssub.s32 1, %s7
  %s10 = scalar_select 0, %s9, %s7
  loop: start=0, step=1, limit=5
  $region2: #{gcn_forward.3} parent=0 // loop_pre_header
    _
  $region3: #{gcn_forward.3} parent=0 // loop_header
    %s12 = sphi 0, %s16
    %p13 = scmp.ge.s32.totalorder %s12, 5
    %s22 = sphi 0, %s24
    %s25 = sphi 0, %s22
    %s26 = sphi 0, %s25
    %s42 = sphi 0, %s26
    %s46 = sphi 0, %s46
    %s48 = sphi 0, %s46
    %s49 = sphi 0, %s48
    %s63 = sphi 0, %s49
    %s67 = sphi 0, %s67
    %s69 = sphi 0, %s67
    %s70 = sphi 0, %s69
    %s84 = sphi 0, %s70
    %s88 = sphi 0, %s88
    %s90 = sphi 0, %s88
    %s91 = sphi 0, %s90
    %s105 = sphi 0, %s91
    %s109 = sphi 0, %s109
    %s111 = sphi 0, %s109
    %s112 = sphi 0, %s111
    %s126 = sphi 0, %s112
    %s130 = sphi 0, %s130
    %s132 = sphi 0, %s130
    %s133 = sphi 0, %s132
    %s147 = sphi 0, %s133
    %s153 = sphi 0, %s155
    %s156 = sphi 0, %s153
    %s157 = sphi 0, %s156
    %s173 = sphi 0, %s157
  $region4: #{gcn_forward.3} parent=0 // loop_header_branch
    %15 = sbr.rel (%p13) target = $region8
  $region5: #{gcn_forward.3} parent=0 // loop_body
    %s17 = ssub.s32 %s12, 1
    %s18 = ssub.s32 %s12, 2
    %s19 = sadd.s32 %s12, 1
    %s20 = ssub.s32 %s12, %s19
    %p21 = scmp.eq.s32.totalorder %s20, 0
    %s23 = sadd.s32 %s22, 1
    %s24 = scalar_select %p21, %s22, %s23
    %p27 = pneg %p21
    %p28 = scmp.eq.s32.totalorder %s12, 2
    %p29 = por %p27, %p28
    %p30 = scmp.ne.s32.totalorder %s22, %s25
    %p31 = scmp.eq.s32.totalorder %s12, 0
    %p32 = por %p30, %p31
    %p33 = scmp.ne.s32.totalorder %s22, %s25
    %p34 = scmp.eq.s32.totalorder %s17, 2
    %p35 = por %p33, %p34
    %p36 = scmp.ne.s32.totalorder %s25, %s26
    %p37 = scmp.eq.s32.totalorder %s17, 0
    %p38 = por %p36, %p37
    %p39 = scmp.ne.s32.totalorder %s25, %s26
    %p40 = scmp.eq.s32.totalorder %s18, 2
    %p41 = por %p39, %p40
    %p43 = scmp.ne.s32.totalorder %s26, %s42
    %p44 = scmp.eq.s32.totalorder %s18, 0
    %p45 = por %p43, %p44
    %s47 = sadd.s32 %s46, 1
    %p50 = scmp.eq.s32.totalorder %s12, 2
    %p51 = scmp.ne.s32.totalorder %s46, %s48
    %p52 = scmp.eq.s32.totalorder %s12, 0
    %p53 = por %p51, %p52
    %p54 = scmp.ne.s32.totalorder %s46, %s48
    %p55 = scmp.eq.s32.totalorder %s17, 2
    %p56 = por %p54, %p55
    %p57 = scmp.ne.s32.totalorder %s48, %s49
    %p58 = scmp.eq.s32.totalorder %s17, 0
    %p59 = por %p57, %p58
    %p60 = scmp.ne.s32.totalorder %s48, %s49
    %p61 = scmp.eq.s32.totalorder %s18, 2
    %p62 = por %p60, %p61
    %p64 = scmp.ne.s32.totalorder %s49, %s63
    %p65 = scmp.eq.s32.totalorder %s18, 0
    %p66 = por %p64, %p65
    %s68 = sadd.s32 %s67, 1
    %p71 = scmp.eq.s32.totalorder %s12, 2
    %p72 = scmp.ne.s32.totalorder %s67, %s69
    %p73 = scmp.eq.s32.totalorder %s12, 0
    %p74 = por %p72, %p73
    %p75 = scmp.ne.s32.totalorder %s67, %s69
    %p76 = scmp.eq.s32.totalorder %s17, 2
    %p77 = por %p75, %p76
    %p78 = scmp.ne.s32.totalorder %s69, %s70
    %p79 = scmp.eq.s32.totalorder %s17, 0
    %p80 = por %p78, %p79
    %p81 = scmp.ne.s32.totalorder %s69, %s70
    %p82 = scmp.eq.s32.totalorder %s18, 2
    %p83 = por %p81, %p82
    %p85 = scmp.ne.s32.totalorder %s70, %s84
    %p86 = scmp.eq.s32.totalorder %s18, 0
    %p87 = por %p85, %p86
    %s89 = sadd.s32 %s88, 1
    %p92 = scmp.eq.s32.totalorder %s12, 2
    %p93 = scmp.ne.s32.totalorder %s88, %s90
    %p94 = scmp.eq.s32.totalorder %s12, 0
    %p95 = por %p93, %p94
    %p96 = scmp.ne.s32.totalorder %s88, %s90
    %p97 = scmp.eq.s32.totalorder %s17, 2
    %p98 = por %p96, %p97
    %p99 = scmp.ne.s32.totalorder %s90, %s91
    %p100 = scmp.eq.s32.totalorder %s17, 0
    %p101 = por %p99, %p100
    %p102 = scmp.ne.s32.totalorder %s90, %s91
    %p103 = scmp.eq.s32.totalorder %s18, 2
    %p104 = por %p102, %p103
    %p106 = scmp.ne.s32.totalorder %s91, %s105
    %p107 = scmp.eq.s32.totalorder %s18, 0
    %p108 = por %p106, %p107
    %s110 = sadd.s32 %s109, 1
    %p113 = scmp.eq.s32.totalorder %s12, 2
    %p114 = scmp.ne.s32.totalorder %s109, %s111
    %p115 = scmp.eq.s32.totalorder %s12, 0
    %p116 = por %p114, %p115
    %p117 = scmp.ne.s32.totalorder %s109, %s111
    %p118 = scmp.eq.s32.totalorder %s17, 2
    %p119 = por %p117, %p118
    %p120 = scmp.ne.s32.totalorder %s111, %s112
    %p121 = scmp.eq.s32.totalorder %s17, 0
    %p122 = por %p120, %p121
    %p123 = scmp.ne.s32.totalorder %s111, %s112
    %p124 = scmp.eq.s32.totalorder %s18, 2
    %p125 = por %p123, %p124
    %p127 = scmp.ne.s32.totalorder %s112, %s126
    %p128 = scmp.eq.s32.totalorder %s18, 0
    %p129 = por %p127, %p128
    %s131 = sadd.s32 %s130, 1
    %p134 = scmp.eq.s32.totalorder %s12, 2
    %p135 = scmp.ne.s32.totalorder %s130, %s132
    %p136 = scmp.eq.s32.totalorder %s12, 0
    %p137 = por %p135, %p136
    %p138 = scmp.ne.s32.totalorder %s130, %s132
    %p139 = scmp.eq.s32.totalorder %s17, 2
    %p140 = por %p138, %p139
    %p141 = scmp.ne.s32.totalorder %s132, %s133
    %p142 = scmp.eq.s32.totalorder %s17, 0
    %p143 = por %p141, %p142
    %p144 = scmp.ne.s32.totalorder %s132, %s133
    %p145 = scmp.eq.s32.totalorder %s18, 2
    %p146 = por %p144, %p145
    %p148 = scmp.ne.s32.totalorder %s133, %s147
    %p149 = scmp.eq.s32.totalorder %s18, 0
    %p150 = por %p148, %p149
    %s151 = ssub.s32 %s12, %s19
    %p152 = scmp.eq.s32.totalorder %s151, 0
    %s154 = sadd.s32 %s153, 1
    %s155 = scalar_select %p152, %s153, %s154
    %p158 = pneg %p152
    %p159 = scmp.eq.s32.totalorder %s12, 2
    %p160 = por %p158, %p159
    %p161 = scmp.ne.s32.totalorder %s153, %s156
    %p162 = scmp.eq.s32.totalorder %s12, 0
    %p163 = por %p161, %p162
    %p164 = scmp.ne.s32.totalorder %s153, %s156
    %p165 = scmp.eq.s32.totalorder %s17, 2
    %p166 = por %p164, %p165
    %p167 = scmp.ne.s32.totalorder %s156, %s157
    %p168 = scmp.eq.s32.totalorder %s17, 0
    %p169 = por %p167, %p168
    %p170 = scmp.ne.s32.totalorder %s156, %s157
    %p171 = scmp.eq.s32.totalorder %s18, 2
    %p172 = por %p170, %p171
    %p174 = scmp.ne.s32.totalorder %s157, %s173
    %p175 = scmp.eq.s32.totalorder %s18, 0
    %p176 = por %p174, %p175
    %p177 = scmp.le.s32.totalorder 1, %s12
    %p178 = scmp.lt.s32.totalorder %s12, 4
    %p179 = pnand %p177, %p178
    %p180 = pneg %p179
    // Predicated region
    $region9: #{gcn_forward.3} parent=5 // pred_check
      _
    $region10: #{gcn_forward.3} parent=5 // pred_check_branch
      %182 = sbr.rel (%p179) target = $region12
    $region11: #{gcn_forward.3} parent=5 // pred_region
      %s183 = ssub.s32 %s12, 1
      // Predicated region
      $region13: #{gcn_forward.3} parent=11 // pred_check
        %p184 = pneg %p59
      $region14: #{gcn_forward.3} parent=11 // pred_check_branch
        %186 = sbr.rel (%p184) target = $region16
      $region15: #{gcn_forward.3} parent=11 // pred_region
        _
      $region16: #{gcn_forward.3} parent=11 // pred_fallthru
        _
      // Predicated region
      $region17: #{gcn_forward.3} parent=11 // pred_check
        %p187 = pneg %p80
      $region18: #{gcn_forward.3} parent=11 // pred_check_branch
        %189 = sbr.rel (%p187) target = $region20
      $region19: #{gcn_forward.3} parent=11 // pred_region
        _
      $region20: #{gcn_forward.3} parent=11 // pred_fallthru
        _
      // Predicated region
      $region21: #{gcn_forward.3} parent=11 // pred_check
        %p190 = pneg %p101
      $region22: #{gcn_forward.3} parent=11 // pred_check_branch
        %192 = sbr.rel (%p190) target = $region24
      $region23: #{gcn_forward.3} parent=11 // pred_region
        _
      $region24: #{gcn_forward.3} parent=11 // pred_fallthru
        _
      // Predicated region
      $region25: #{gcn_forward.3} parent=11 // pred_check
        %p193 = pneg %p122
      $region26: #{gcn_forward.3} parent=11 // pred_check_branch
        %195 = sbr.rel (%p193) target = $region28
      $region27: #{gcn_forward.3} parent=11 // pred_region
        _
      $region28: #{gcn_forward.3} parent=11 // pred_fallthru
        _
      // Predicated region
      $region29: #{gcn_forward.3} parent=11 // pred_check
        %p196 = pneg %p143
      $region30: #{gcn_forward.3} parent=11 // pred_check_branch
        %198 = sbr.rel (%p196) target = $region32
      $region31: #{gcn_forward.3} parent=11 // pred_region
        _
      $region32: #{gcn_forward.3} parent=11 // pred_fallthru
        _
    $region12: #{gcn_forward.3} parent=5 // pred_fallthru
      _
    %p199 = scmp.lt.s32.totalorder %s12, 3
    // Predicated region
    $region33: #{gcn_forward.3} parent=5 // pred_check
      %p200 = pneg %p199
    $region34: #{gcn_forward.3} parent=5 // pred_check_branch
      %202 = sbr.rel (%p200) target = $region36
    $region35: #{gcn_forward.3} parent=5 // pred_region
      // Predicated region
      $region37: #{gcn_forward.3} parent=35 // pred_check
        %p203 = pneg %p32
      $region38: #{gcn_forward.3} parent=35 // pred_check_branch
        %205 = sbr.rel (%p203) target = $region40
      $region39: #{gcn_forward.3} parent=35 // pred_region
        %s206 = smul.u32 2, %s12
        %p207 = scmp.lt.s32.totalorder %s206, 5
        %s208 = scalar_select %p207, %s206, 5
        %s209 = smul.addr %s208, 4
        %s210 = scalar_lea.vmem %s0, %s209
        %s211 = smul.u32 2, %s12
      $region40: #{gcn_forward.3} parent=35 // pred_fallthru
        _
    $region36: #{gcn_forward.3} parent=5 // pred_fallthru
      _
    %p212 = scmp.le.s32.totalorder 1, %s12
    %p213 = scmp.lt.s32.totalorder %s12, 4
    %p214 = pnand %p212, %p213
    %p215 = pneg %p214
    // Predicated region
    $region41: #{gcn_forward.3} parent=5 // pred_check
      _
    $region42: #{gcn_forward.3} parent=5 // pred_check_branch
      %217 = sbr.rel (%p214) target = $region44
    $region43: #{gcn_forward.3} parent=5 // pred_region
      %s218 = ssub.s32 %s12, 1
      %s219 = smul.u32 2, %s17
      %p220 = scmp.lt.s32.totalorder %s219, 5
      %s221 = scalar_select %p220, %s219, 5
      %s222 = smul.addr %s221, 4
      %s223 = scalar_lea.vmem %s0, %s222
      %p224 = pneg %p38
      %p225 = pneg %p35
      %p226 = pneg %p59
      %p227 = pneg %p56
      %p228 = pneg %p80
      %p229 = pneg %p77
      %p230 = pneg %p101
      %p231 = pneg %p98
      %p232 = pneg %p122
      %p233 = pneg %p119
      %p234 = pneg %p143
      %p235 = pneg %p140
      %p236 = pneg %p169
      %p237 = pneg %p166
      %s238 = smul.u32 2, %s17
      %p239 = scmp.lt.s32.totalorder %s238, 5
      %s240 = scalar_select %p239, %s238, 5
      %s241 = smul.addr %s240, 8
      %s242 = scalar_lea.vmem %s6, %s241
      %s243 = smul.u32 2, %s17
      %p244 = scmp.lt.s32.totalorder %s243, 5
      %s245 = scalar_select %p244, %s243, 5
      %s246 = smul.addr %s245, 4
      %s247 = scalar_lea.vmem %s0, %s246
      %s248 = smul.u32 2, %s17
      %s249 = smul.u32 2, %s17
      %p250 = scmp.lt.s32.totalorder %s249, 5
      %s251 = scalar_select %p250, %s249, 5
      %s252 = smul.addr %s251, 8
      %s253 = scalar_lea.vmem %s6, %s252
      %s254 = smul.u32 2, %s17
      %p256 = scmp.eq.s32.totalorder %s17, 0
      // Predicated region
      $region45: #{gcn_forward.3} parent=43 // pred_check
        %p257 = pneg %p256
      $region46: #{gcn_forward.3} parent=43 // pred_check_branch
        %259 = sbr.rel (%p257) target = $region48
      $region47: #{gcn_forward.3} parent=43 // pred_region
        %v260 = vld [vmem:[%s1] sm:$0xf]
        %v261 = vld [vmem:[%s1 + $0x4] sm:$0xf]
        %v262 = vld [vmem:[%s1 + $0x8] sm:$0xf]
        %v263 = vld [vmem:[%s1 + $0xc] sm:$0xf]
        %v264 = vld [vmem:[%s1 + $0x10] sm:$0xf]
        %v265 = vld [vmem:[%s1 + $0x14] sm:$0xf]
        %v266 = vld [vmem:[%s2] sm:$0xf]
        %v267 = vld [vmem:[%s2 + $0x4] sm:$0xf]
        %v268 = vld [vmem:[%s2 + $0x8] sm:$0xf]
        %v269 = vld [vmem:[%s2 + $0xc] sm:$0xf]
        %v270 = vld [vmem:[%s2 + $0x10] sm:$0xf]
        %v271 = vld [vmem:[%s2 + $0x14] sm:$0xf]
        %v272 = vld [vmem:[%s2 + $0x18] sm:$0xf]
        %v273 = vld [vmem:[%s2 + $0x1c] sm:$0xf]
        %v274 = vld [vmem:[%s2 + $0x20] sm:$0xf]
        %v275 = vld [vmem:[%s2 + $0x24] sm:$0xf]
        %v276 = vld [vmem:[%s2 + $0x28] sm:$0xf]
        %v277 = vld [vmem:[%s2 + $0x2c] sm:$0xf]
        %v278 = vld [vmem:[%s2 + $0x30] sm:$0xf]
        %v279 = vld [vmem:[%s2 + $0x34] sm:$0xf]
        %v280 = vld [vmem:[%s2 + $0x38] sm:$0xf]
        %v281 = vld [vmem:[%s2 + $0x3c] sm:$0xf]
        %v288 = vunpack.c.l.b16 %v260
        %v289 = vunpack.c.l.b16 %v261
        %v290 = vunpack.c.l.b16 %v262
        %v291 = vunpack.c.l.b16 %v263
        %v292 = vunpack.c.l.b16 %v264
        %v293 = vunpack.c.l.b16 %v265
        %v294 = vpack.c.b16 %v289, %v288
        %v295 = vpack.c.b16 %v291, %v290
        %v296 = vpack.c.b16 %v293, %v292
        %v316 = vunpack.c.l.b16 %v266
        %v317 = vunpack.c.l.b16 %v267
        %v318 = vunpack.c.l.b16 %v268
        %v319 = vunpack.c.l.b16 %v269
        %v320 = vunpack.c.l.b16 %v270
        %v321 = vunpack.c.l.b16 %v271
        %v322 = vunpack.c.l.b16 %v272
        %v323 = vunpack.c.l.b16 %v273
        %v324 = vunpack.c.l.b16 %v274
        %v325 = vunpack.c.l.b16 %v275
        %v326 = vunpack.c.l.b16 %v276
        %v327 = vunpack.c.l.b16 %v277
        %v328 = vunpack.c.l.b16 %v278
        %v329 = vunpack.c.l.b16 %v279
        %v330 = vunpack.c.l.b16 %v280
        %v331 = vunpack.c.l.b16 %v281
        %v332 = vpack.c.b16 %v317, %v316
        %v333 = vpack.c.b16 %v319, %v318
        %v334 = vpack.c.b16 %v321, %v320
        %v335 = vpack.c.b16 %v323, %v322
        %v336 = vpack.c.b16 %v325, %v324
        %v337 = vpack.c.b16 %v327, %v326
        %v338 = vpack.c.b16 %v329, %v328
        %v339 = vpack.c.b16 %v331, %v330
        %348 = vmatprep.subr.bf16.mxu0 0
        %349 = vmatpush1.bf16.msra.mxu0 %v332
        %350 = vmatprep.subr.bf16.mxu0 0
        %351 = vmatpush1.bf16.msra.mxu0 %v333
        %352 = vmatprep.subr.bf16.mxu0 0
        %353 = vmatpush1.bf16.msra.mxu0 %v334
        %354 = vmatprep.subr.bf16.mxu0 0
        %355 = vmatpush1.bf16.msra.mxu0 %v335
        %356 = vmatprep.subr.bf16.mxu0 0
        %357 = vmatpush1.bf16.msra.mxu0 %v336
        %358 = vmatprep.subr.bf16.mxu0 0
        %359 = vmatpush1.bf16.msra.mxu0 %v337
        %360 = vmatprep.subr.bf16.mxu0 0
        %361 = vmatpush1.bf16.msra.mxu0 %v338
        %362 = vmatprep.subr.bf16.mxu0 0
        %363 = vmatpush1.bf16.msra.mxu0 %v339
        %364 = vmatprep.subr.bf16.mxu0 0
        %365 = vmatpush1.bf16.msra.mxu0 0
        %366 = vmatprep.subr.bf16.mxu0 0
        %367 = vmatpush1.bf16.msra.mxu0 0
        %368 = vmatprep.subr.bf16.mxu0 0
        %369 = vmatpush1.bf16.msra.mxu0 0
        %370 = vmatprep.subr.bf16.mxu0 0
        %371 = vmatpush1.bf16.msra.mxu0 0
        %372 = vmatprep.subr.bf16.mxu0 0
        %373 = vmatpush1.bf16.msra.mxu0 0
        %374 = vmatprep.subr.bf16.mxu0 0
        %375 = vmatpush1.bf16.msra.mxu0 0
        %376 = vmatprep.subr.bf16.mxu0 0
        %377 = vmatpush1.bf16.msra.mxu0 0
        %378 = vmatprep.subr.bf16.mxu0 0
        %379 = vmatpush1.bf16.msra.mxu0 0
        %380 = vmatprep.mubr.bf16.mxu0 0
        %381 = vmatmul.mubr.bf16.gmra.mrb[0].mxu0 %v294
        %v382 = vpop.f32.mrb[0].mxu0
        %v383 = vadd.f32 0.0, %v382
        %v384 = vpop.f32.mrb[0].mxu0
        %v385 = vpop.f32.mrb[0].mxu0
        %v386 = vadd.f32 0.0, %v385
        %v387 = vpop.f32.mrb[0].mxu0
        %388 = vmatprep.mubr.bf16.mxu0 0
        %389 = vmatmul.mubr.bf16.gmra.mrb[0].mxu0 %v295
        %v390 = vpop.f32.mrb[0].mxu0
        %v391 = vadd.f32 0.0, %v390
        %v392 = vpop.f32.mrb[0].mxu0
        %v393 = vpop.f32.mrb[0].mxu0
        %v394 = vadd.f32 0.0, %v393
        %v395 = vpop.f32.mrb[0].mxu0
        %396 = vmatprep.mubr.bf16.mxu0 0
        %397 = vmatmul.mubr.bf16.gmra.mrb[0].mxu0 %v296
        %v398 = vpop.f32.mrb[0].mxu0
        %v399 = vadd.f32 0.0, %v398
        %v400 = vpop.f32.mrb[0].mxu0
        %v401 = vpop.f32.mrb[0].mxu0
        %v402 = vadd.f32 0.0, %v401
        %v403 = vpop.f32.mrb[0].mxu0
        %404 = vdwg.mxu0
        %v405 = vpack.c.bf16 %v386, %v383
        %v406 = vpack.c.bf16 %v394, %v391
        %v407 = vpack.c.bf16 %v402, %v399
        %408 = vst [vmem:[#allocation2] sm:$0xff] %v405
        %409 = vst [vmem:[#allocation2 + $0x8] sm:$0xff] %v406
        %410 = vst [vmem:[#allocation2 + $0x10] sm:$0xff] %v407
      $region48: #{gcn_forward.3} parent=43 // pred_fallthru
        _
      %v411 = vld [vmem:[%s247] sm:$0xf]
      %v412 = vld [vmem:[%s247 + $0x4] sm:$0xf]
      %v413 = vld [vmem:[#allocation2] sm:$0xff]
      %v414 = vld [vmem:[#allocation2 + $0x8] sm:$0xff]
      %v415 = vld [vmem:[#allocation2 + $0x10] sm:$0xff]
      %v416 = vld [vmem:[%s3] sm:$0x1]
      %v418 = vlaneseq
      %v419 = vshrl.u32 %v418, 7
      %v420 = vsub.s32 0, %v419
      %v421 = vrot.slane %v416, %v420
      %v425 = vunpack.c.l.b16 %v411
      %v426 = vunpack.c.l.b16 %v412
      %v427 = vpack.c.b16 %v426, %v425
      %vm428 = vcmask 392192
      %v430 = vsel %vm428, %v427, 0
      %432 = vmatprep.subr.bf16.mxu0 0
      %433 = vmatpush1.bf16.msra.mxu0 %v413
      %434 = vmatprep.subr.bf16.mxu0 0
      %435 = vmatpush1.bf16.msra.mxu0 %v414
      %436 = vmatprep.subr.bf16.mxu0 0
      %437 = vmatpush1.bf16.msra.mxu0 %v415
      %438 = vmatprep.subr.bf16.mxu0 0
      %439 = vmatpush1.bf16.msra.mxu0 0
      %440 = vmatprep.subr.bf16.mxu0 0
      %441 = vmatpush1.bf16.msra.mxu0 0
      %442 = vmatprep.subr.bf16.mxu0 0
      %443 = vmatpush1.bf16.msra.mxu0 0
      %444 = vmatprep.subr.bf16.mxu0 0
      %445 = vmatpush1.bf16.msra.mxu0 0
      %446 = vmatprep.subr.bf16.mxu0 0
      %447 = vmatpush1.bf16.msra.mxu0 0
      %448 = vmatprep.subr.bf16.mxu0 0
      %449 = vmatpush1.bf16.msra.mxu0 0
      %450 = vmatprep.subr.bf16.mxu0 0
      %451 = vmatpush1.bf16.msra.mxu0 0
      %452 = vmatprep.subr.bf16.mxu0 0
      %453 = vmatpush1.bf16.msra.mxu0 0
      %454 = vmatprep.subr.bf16.mxu0 0
      %455 = vmatpush1.bf16.msra.mxu0 0
      %456 = vmatprep.subr.bf16.mxu0 0
      %457 = vmatpush1.bf16.msra.mxu0 0
      %458 = vmatprep.subr.bf16.mxu0 0
      %459 = vmatpush1.bf16.msra.mxu0 0
      %460 = vmatprep.subr.bf16.mxu0 0
      %461 = vmatpush1.bf16.msra.mxu0 0
      %462 = vmatprep.subr.bf16.mxu0 0
      %463 = vmatpush1.bf16.msra.mxu0 0
      %464 = vmatprep.mubr.bf16.mxu0 0
      %465 = vmatmul.mubr.bf16.gmra.mrb[0].mxu0 %v430
      %v466 = vpop.f32.mrb[0].mxu0
      %v467 = vadd.f32 %v421, %v466
      %v468 = vpop.f32.mrb[0].mxu0
      %v469 = vpop.f32.mrb[0].mxu0
      %v470 = vadd.f32 %v421, %v469
      %v471 = vpop.f32.mrb[0].mxu0
      %472 = vdwg.mxu0
      %v473 = vmax.f32 %v467, 0.0
      %v474 = vmax.f32 %v470, 0.0
      %v475 = vpack.c.bf16 %v474, %v473
      %v476 = vld [vmem:[%s4] sm:$0xf]
      %v477 = vld [vmem:[%s4 + $0x4] sm:$0xf]
      %v478 = vld [vmem:[%s4 + $0x8] sm:$0xf]
      %v479 = vld [vmem:[%s4 + $0xc] sm:$0xf]
      %v480 = vld [vmem:[%s4 + $0x10] sm:$0xf]
      %v481 = vld [vmem:[%s4 + $0x14] sm:$0xf]
      %v482 = vld [vmem:[%s4 + $0x18] sm:$0xf]
      %v483 = vld [vmem:[%s4 + $0x1c] sm:$0xf]
      %v484 = vld [vmem:[%s4 + $0x20] sm:$0xf]
      %v485 = vld [vmem:[%s4 + $0x24] sm:$0xf]
      %v486 = vld [vmem:[%s4 + $0x28] sm:$0xf]
      %v487 = vld [vmem:[%s4 + $0x2c] sm:$0xf]
      %v488 = vld [vmem:[%s4 + $0x30] sm:$0xf]
      %v489 = vld [vmem:[%s4 + $0x34] sm:$0xf]
      %v490 = vld [vmem:[%s4 + $0x38] sm:$0xf]
      %v491 = vld [vmem:[%s4 + $0x3c] sm:$0xf]
      %v492 = vld [vmem:[%s5] sm:$0x1]
      %v494 = vlaneseq
      %v495 = vshrl.u32 %v494, 7
      %v496 = vsub.s32 0, %v495
      %v497 = vrot.slane %v492, %v496
      %v515 = vunpack.c.l.b16 %v476
      %v516 = vunpack.c.l.b16 %v477
      %v517 = vunpack.c.l.b16 %v478
      %v518 = vunpack.c.l.b16 %v479
      %v519 = vunpack.c.l.b16 %v480
      %v520 = vunpack.c.l.b16 %v481
      %v521 = vunpack.c.l.b16 %v482
      %v522 = vunpack.c.l.b16 %v483
      %v523 = vunpack.c.l.b16 %v484
      %v524 = vunpack.c.l.b16 %v485
      %v525 = vunpack.c.l.b16 %v486
      %v526 = vunpack.c.l.b16 %v487
      %v527 = vunpack.c.l.b16 %v488
      %v528 = vunpack.c.l.b16 %v489
      %v529 = vunpack.c.l.b16 %v490
      %v530 = vunpack.c.l.b16 %v491
      %v531 = vpack.c.b16 %v516, %v515
      %v532 = vpack.c.b16 %v518, %v517
      %v533 = vpack.c.b16 %v520, %v519
      %v534 = vpack.c.b16 %v522, %v521
      %v535 = vpack.c.b16 %v524, %v523
      %v536 = vpack.c.b16 %v526, %v525
      %v537 = vpack.c.b16 %v528, %v527
      %v538 = vpack.c.b16 %v530, %v529
      %547 = vmatprep.subr.bf16.mxu0 0
      %548 = vmatpush1.bf16.msra.mxu0 %v531
      %549 = vmatprep.subr.bf16.mxu0 0
      %550 = vmatpush1.bf16.msra.mxu0 %v532
      %551 = vmatprep.subr.bf16.mxu0 0
      %552 = vmatpush1.bf16.msra.mxu0 %v533
      %553 = vmatprep.subr.bf16.mxu0 0
      %554 = vmatpush1.bf16.msra.mxu0 %v534
      %555 = vmatprep.subr.bf16.mxu0 0
      %556 = vmatpush1.bf16.msra.mxu0 %v535
      %557 = vmatprep.subr.bf16.mxu0 0
      %558 = vmatpush1.bf16.msra.mxu0 %v536
      %559 = vmatprep.subr.bf16.mxu0 0
      %560 = vmatpush1.bf16.msra.mxu0 %v537
      %561 = vmatprep.subr.bf16.mxu0 0
      %562 = vmatpush1.bf16.msra.mxu0 %v538
      %563 = vmatprep.subr.bf16.mxu0 0
      %564 = vmatpush1.bf16.msra.mxu0 0
      %565 = vmatprep.subr.bf16.mxu0 0
      %566 = vmatpush1.bf16.msra.mxu0 0
      %567 = vmatprep.subr.bf16.mxu0 0
      %568 = vmatpush1.bf16.msra.mxu0 0
      %569 = vmatprep.subr.bf16.mxu0 0
      %570 = vmatpush1.bf16.msra.mxu0 0
      %571 = vmatprep.subr.bf16.mxu0 0
      %572 = vmatpush1.bf16.msra.mxu0 0
      %573 = vmatprep.subr.bf16.mxu0 0
      %574 = vmatpush1.bf16.msra.mxu0 0
      %575 = vmatprep.subr.bf16.mxu0 0
      %576 = vmatpush1.bf16.msra.mxu0 0
      %577 = vmatprep.subr.bf16.mxu0 0
      %578 = vmatpush1.bf16.msra.mxu0 0
      %579 = vmatprep.mubr.bf16.mxu0 0
      %580 = vmatmul.mubr.bf16.gmra.mrb[0].mxu0 %v475
      %v581 = vpop.f32.mrb[0].mxu0
      %v582 = vadd.f32 %v497, %v581
      %v583 = vpop.f32.mrb[0].mxu0
      %v584 = vpop.f32.mrb[0].mxu0
      %v585 = vadd.f32 %v497, %v584
      %v586 = vpop.f32.mrb[0].mxu0
      %587 = vdwg.mxu0
      %v588 = vlaneseq
      %v589 = vand.u32 %v588, 127
      %vm590 = vcmp.lt.s32.totalorder %v589, 3
      %v591 = vsel %vm590, %v582, -1e+30
      %v592 = vsel %vm590, %v585, -1e+30
      %593 = vmax.xlane.f32.xlu0 %v591
      %v594 = vpop.xlane.xlu0 %593
      %595 = vmax.xlane.f32.xlu0 %v592
      %v596 = vpop.xlane.xlu0 %595
      %v597 = vsub.f32 %v591, %v594
      %v598 = vsub.f32 %v592, %v596
      %v599 = vmul.f32 %v597, 1.442695
      %v600 = vpow.pop %v599
      %v601 = vmul.f32 %v598, 1.442695
      %v602 = vpow.pop %v601
      %603 = vadd.xlane.f32.xlu0 %v600
      %v604 = vpop.xlane.xlu0 %603
      %605 = vadd.xlane.f32.xlu0 %v602
      %v606 = vpop.xlane.xlu0 %605
      %v607 = vrcp.pop %v604
      %v608 = vrcp.pop %v606
      %v609 = vmul.f32 %v600, %v607
      %v610 = vmul.f32 %v602, %v608
      %611 = vst [vmem:[%s253] sm:$0xff] %v609
      %612 = vst [vmem:[%s253 + $0x8] sm:$0xff] %v610
      %s613 = smul.u32 2, %s17
      %p614 = scmp.lt.s32.totalorder %s613, 5
      %s615 = scalar_select %p614, %s613, 5
      %s616 = smul.addr %s615, 8
      %s617 = scalar_lea.vmem %s6, %s616
      // Predicated region
      $region49: #{gcn_forward.3} parent=43 // pred_check
        %p618 = pneg %p166
      $region50: #{gcn_forward.3} parent=43 // pred_check_branch
        %620 = sbr.rel (%p618) target = $region52
      $region51: #{gcn_forward.3} parent=43 // pred_region
        %s621 = smul.u32 2, %s17
      $region52: #{gcn_forward.3} parent=43 // pred_fallthru
        _
    $region44: #{gcn_forward.3} parent=5 // pred_fallthru
      _
    %p622 = scmp.le.s32.totalorder 2, %s12
    // Predicated region
    $region53: #{gcn_forward.3} parent=5 // pred_check
      %p623 = pneg %p622
    $region54: #{gcn_forward.3} parent=5 // pred_check_branch
      %625 = sbr.rel (%p623) target = $region56
    $region55: #{gcn_forward.3} parent=5 // pred_region
      %s626 = ssub.s32 %s12, 2
      // Predicated region
      $region57: #{gcn_forward.3} parent=55 // pred_check
        %p627 = pneg %p172
      $region58: #{gcn_forward.3} parent=55 // pred_check_branch
        %629 = sbr.rel (%p627) target = $region60
      $region59: #{gcn_forward.3} parent=55 // pred_region
        %s630 = smul.u32 2, %s18
        %p631 = scmp.lt.s32.totalorder %s630, 5
        %s632 = scalar_select %p631, %s630, 5
        %s633 = smul.addr %s632, 8
        %s634 = scalar_lea.vmem %s6, %s633
      $region60: #{gcn_forward.3} parent=55 // pred_fallthru
        _
    $region56: #{gcn_forward.3} parent=5 // pred_fallthru
      _
  $region6: #{gcn_forward.3} parent=0 // loop_footer
    %s16 = sadd.s32 1, %s12
  $region7: #{gcn_forward.3} parent=0 // loop_footer_branch
    %11 = sbr.rel target = $region3
  $region8: #{gcn_forward.3} parent=0 // loop_exit
    _

// kernel: gcn_forward.2
$region0: #{gcn_forward.2}
  #allocation0 [shape = 'u32[]', space=smem, size = 0x4, offset = 0x4, fixed_abs, tag = 'smem constant byte address 0x4 - core index']
  #allocation1 [shape = 'u32[144,128]{1,0:T(1,128)}', space=vmem, size = 0x12000, scoped, tag = 'internal scratch']
  #allocation2 [shape = 'bf16[48,128]{1,0:T(16,128)(2,1)}', space=vmem, size = 0x3000, scoped, tag = 'scratch operand']
  %s0 = inlined_call_operand.vmem [shape: bf16[48,48], index: 0, kind: input, shape index: {}]
  %s1 = inlined_call_operand.vmem [shape: bf16[48,128], index: 1, kind: input, shape index: {}]
  %s2 = inlined_call_operand.vmem [shape: bf16[128,128], index: 2, kind: input, shape index: {}]
  %s3 = inlined_call_operand.vmem [shape: f32[1,128], index: 3, kind: input, shape index: {}]
  %s4 = inlined_call_operand.vmem [shape: bf16[48,128], index: 4, kind: output, shape index: {}]
  %s5 = sld [smem:[#allocation0]]
  $region53: #{gcn_forward.2} parent=0
    _
  %s7 = ssub.s32 1, %s5
  %s8 = scalar_select 0, %s7, %s5
  loop: start=0, step=1, limit=5
  $region2: #{gcn_forward.2} parent=0 // loop_pre_header
    _
  $region3: #{gcn_forward.2} parent=0 // loop_header
    %s10 = sphi 0, %s14
    %p11 = scmp.ge.s32.totalorder %s10, 5
    %s20 = sphi 0, %s22
    %s23 = sphi 0, %s20
    %s24 = sphi 0, %s23
    %s40 = sphi 0, %s24
    %s44 = sphi 0, %s44
    %s46 = sphi 0, %s44
    %s47 = sphi 0, %s46
    %s61 = sphi 0, %s47
    %s65 = sphi 0, %s65
    %s67 = sphi 0, %s65
    %s68 = sphi 0, %s67
    %s82 = sphi 0, %s68
    %s86 = sphi 0, %s86
    %s88 = sphi 0, %s86
    %s89 = sphi 0, %s88
    %s103 = sphi 0, %s89
    %s109 = sphi 0, %s111
    %s112 = sphi 0, %s109
    %s113 = sphi 0, %s112
    %s129 = sphi 0, %s113
  $region4: #{gcn_forward.2} parent=0 // loop_header_branch
    %13 = sbr.rel (%p11) target = $region8
  $region5: #{gcn_forward.2} parent=0 // loop_body
    %s15 = ssub.s32 %s10, 1
    %s16 = ssub.s32 %s10, 2
    %s17 = sadd.s32 %s10, 1
    %s18 = ssub.s32 %s10, %s17
    %p19 = scmp.eq.s32.totalorder %s18, 0
    %s21 = sadd.s32 %s20, 1
    %s22 = scalar_select %p19, %s20, %s21
    %p25 = pneg %p19
    %p26 = scmp.eq.s32.totalorder %s10, 2
    %p27 = por %p25, %p26
    %p28 = scmp.ne.s32.totalorder %s20, %s23
    %p29 = scmp.eq.s32.totalorder %s10, 0
    %p30 = por %p28, %p29
    %p31 = scmp.ne.s32.totalorder %s20, %s23
    %p32 = scmp.eq.s32.totalorder %s15, 2
    %p33 = por %p31, %p32
    %p34 = scmp.ne.s32.totalorder %s23, %s24
    %p35 = scmp.eq.s32.totalorder %s15, 0
    %p36 = por %p34, %p35
    %p37 = scmp.ne.s32.totalorder %s23, %s24
    %p38 = scmp.eq.s32.totalorder %s16, 2
    %p39 = por %p37, %p38
    %p41 = scmp.ne.s32.totalorder %s24, %s40
    %p42 = scmp.eq.s32.totalorder %s16, 0
    %p43 = por %p41, %p42
    %s45 = sadd.s32 %s44, 1
    %p48 = scmp.eq.s32.totalorder %s10, 2
    %p49 = scmp.ne.s32.totalorder %s44, %s46
    %p50 = scmp.eq.s32.totalorder %s10, 0
    %p51 = por %p49, %p50
    %p52 = scmp.ne.s32.totalorder %s44, %s46
    %p53 = scmp.eq.s32.totalorder %s15, 2
    %p54 = por %p52, %p53
    %p55 = scmp.ne.s32.totalorder %s46, %s47
    %p56 = scmp.eq.s32.totalorder %s15, 0
    %p57 = por %p55, %p56
    %p58 = scmp.ne.s32.totalorder %s46, %s47
    %p59 = scmp.eq.s32.totalorder %s16, 2
    %p60 = por %p58, %p59
    %p62 = scmp.ne.s32.totalorder %s47, %s61
    %p63 = scmp.eq.s32.totalorder %s16, 0
    %p64 = por %p62, %p63
    %s66 = sadd.s32 %s65, 1
    %p69 = scmp.eq.s32.totalorder %s10, 2
    %p70 = scmp.ne.s32.totalorder %s65, %s67
    %p71 = scmp.eq.s32.totalorder %s10, 0
    %p72 = por %p70, %p71
    %p73 = scmp.ne.s32.totalorder %s65, %s67
    %p74 = scmp.eq.s32.totalorder %s15, 2
    %p75 = por %p73, %p74
    %p76 = scmp.ne.s32.totalorder %s67, %s68
    %p77 = scmp.eq.s32.totalorder %s15, 0
    %p78 = por %p76, %p77
    %p79 = scmp.ne.s32.totalorder %s67, %s68
    %p80 = scmp.eq.s32.totalorder %s16, 2
    %p81 = por %p79, %p80
    %p83 = scmp.ne.s32.totalorder %s68, %s82
    %p84 = scmp.eq.s32.totalorder %s16, 0
    %p85 = por %p83, %p84
    %s87 = sadd.s32 %s86, 1
    %p90 = scmp.eq.s32.totalorder %s10, 2
    %p91 = scmp.ne.s32.totalorder %s86, %s88
    %p92 = scmp.eq.s32.totalorder %s10, 0
    %p93 = por %p91, %p92
    %p94 = scmp.ne.s32.totalorder %s86, %s88
    %p95 = scmp.eq.s32.totalorder %s15, 2
    %p96 = por %p94, %p95
    %p97 = scmp.ne.s32.totalorder %s88, %s89
    %p98 = scmp.eq.s32.totalorder %s15, 0
    %p99 = por %p97, %p98
    %p100 = scmp.ne.s32.totalorder %s88, %s89
    %p101 = scmp.eq.s32.totalorder %s16, 2
    %p102 = por %p100, %p101
    %p104 = scmp.ne.s32.totalorder %s89, %s103
    %p105 = scmp.eq.s32.totalorder %s16, 0
    %p106 = por %p104, %p105
    %s107 = ssub.s32 %s10, %s17
    %p108 = scmp.eq.s32.totalorder %s107, 0
    %s110 = sadd.s32 %s109, 1
    %s111 = scalar_select %p108, %s109, %s110
    %p114 = pneg %p108
    %p115 = scmp.eq.s32.totalorder %s10, 2
    %p116 = por %p114, %p115
    %p117 = scmp.ne.s32.totalorder %s109, %s112
    %p118 = scmp.eq.s32.totalorder %s10, 0
    %p119 = por %p117, %p118
    %p120 = scmp.ne.s32.totalorder %s109, %s112
    %p121 = scmp.eq.s32.totalorder %s15, 2
    %p122 = por %p120, %p121
    %p123 = scmp.ne.s32.totalorder %s112, %s113
    %p124 = scmp.eq.s32.totalorder %s15, 0
    %p125 = por %p123, %p124
    %p126 = scmp.ne.s32.totalorder %s112, %s113
    %p127 = scmp.eq.s32.totalorder %s16, 2
    %p128 = por %p126, %p127
    %p130 = scmp.ne.s32.totalorder %s113, %s129
    %p131 = scmp.eq.s32.totalorder %s16, 0
    %p132 = por %p130, %p131
    %p133 = scmp.le.s32.totalorder 1, %s10
    %p134 = scmp.lt.s32.totalorder %s10, 4
    %p135 = pnand %p133, %p134
    %p136 = pneg %p135
    // Predicated region
    $region9: #{gcn_forward.2} parent=5 // pred_check
      _
    $region10: #{gcn_forward.2} parent=5 // pred_check_branch
      %138 = sbr.rel (%p135) target = $region12
    $region11: #{gcn_forward.2} parent=5 // pred_region
      %s139 = ssub.s32 %s10, 1
      // Predicated region
      $region13: #{gcn_forward.2} parent=11 // pred_check
        %p140 = pneg %p57
      $region14: #{gcn_forward.2} parent=11 // pred_check_branch
        %142 = sbr.rel (%p140) target = $region16
      $region15: #{gcn_forward.2} parent=11 // pred_region
        _
      $region16: #{gcn_forward.2} parent=11 // pred_fallthru
        _
      // Predicated region
      $region17: #{gcn_forward.2} parent=11 // pred_check
        %p143 = pneg %p78
      $region18: #{gcn_forward.2} parent=11 // pred_check_branch
        %145 = sbr.rel (%p143) target = $region20
      $region19: #{gcn_forward.2} parent=11 // pred_region
        _
      $region20: #{gcn_forward.2} parent=11 // pred_fallthru
        _
      // Predicated region
      $region21: #{gcn_forward.2} parent=11 // pred_check
        %p146 = pneg %p99
      $region22: #{gcn_forward.2} parent=11 // pred_check_branch
        %148 = sbr.rel (%p146) target = $region24
      $region23: #{gcn_forward.2} parent=11 // pred_region
        _
      $region24: #{gcn_forward.2} parent=11 // pred_fallthru
        _
    $region12: #{gcn_forward.2} parent=5 // pred_fallthru
      _
    %p149 = scmp.lt.s32.totalorder %s10, 3
    // Predicated region
    $region25: #{gcn_forward.2} parent=5 // pred_check
      %p150 = pneg %p149
    $region26: #{gcn_forward.2} parent=5 // pred_check_branch
      %152 = sbr.rel (%p150) target = $region28
    $region27: #{gcn_forward.2} parent=5 // pred_region
      // Predicated region
      $region29: #{gcn_forward.2} parent=27 // pred_check
        %p153 = pneg %p30
      $region30: #{gcn_forward.2} parent=27 // pred_check_branch
        %155 = sbr.rel (%p153) target = $region32
      $region31: #{gcn_forward.2} parent=27 // pred_region
        %s156 = smul.u32 2, %s10
        %p157 = scmp.lt.s32.totalorder %s156, 5
        %s158 = scalar_select %p157, %s156, 5
        %s159 = smul.addr %s158, 4
        %s160 = scalar_lea.vmem %s0, %s159
        %s161 = smul.u32 2, %s10
      $region32: #{gcn_forward.2} parent=27 // pred_fallthru
        _
    $region28: #{gcn_forward.2} parent=5 // pred_fallthru
      _
    %p162 = scmp.le.s32.totalorder 1, %s10
    %p163 = scmp.lt.s32.totalorder %s10, 4
    %p164 = pnand %p162, %p163
    %p165 = pneg %p164
    // Predicated region
    $region33: #{gcn_forward.2} parent=5 // pred_check
      _
    $region34: #{gcn_forward.2} parent=5 // pred_check_branch
      %167 = sbr.rel (%p164) target = $region36
    $region35: #{gcn_forward.2} parent=5 // pred_region
      %s168 = ssub.s32 %s10, 1
      %s169 = smul.u32 2, %s15
      %p170 = scmp.lt.s32.totalorder %s169, 5
      %s171 = scalar_select %p170, %s169, 5
      %s172 = smul.addr %s171, 4
      %s173 = scalar_lea.vmem %s0, %s172
      %p174 = pneg %p36
      %p175 = pneg %p33
      %p176 = pneg %p57
      %p177 = pneg %p54
      %p178 = pneg %p78
      %p179 = pneg %p75
      %p180 = pneg %p99
      %p181 = pneg %p96
      %p182 = pneg %p125
      %p183 = pneg %p122
      %s184 = smul.u32 2, %s15
      %p185 = scmp.lt.s32.totalorder %s184, 5
      %s186 = scalar_select %p185, %s184, 5
      %s187 = smul.addr %s186, 4
      %s188 = scalar_lea.vmem %s4, %s187
      %s189 = smul.u32 2, %s15
      %p190 = scmp.lt.s32.totalorder %s189, 5
      %s191 = scalar_select %p190, %s189, 5
      %s192 = smul.addr %s191, 4
      %s193 = scalar_lea.vmem %s0, %s192
      %s194 = smul.u32 2, %s15
      %s195 = smul.u32 2, %s15
      %p196 = scmp.lt.s32.totalorder %s195, 5
      %s197 = scalar_select %p196, %s195, 5
      %s198 = smul.addr %s197, 4
      %s199 = scalar_lea.vmem %s4, %s198
      %s200 = smul.u32 2, %s15
      %p202 = scmp.eq.s32.totalorder %s15, 0
      // Predicated region
      $region37: #{gcn_forward.2} parent=35 // pred_check
        %p203 = pneg %p202
      $region38: #{gcn_forward.2} parent=35 // pred_check_branch
        %205 = sbr.rel (%p203) target = $region40
      $region39: #{gcn_forward.2} parent=35 // pred_region
        %v206 = vld [vmem:[%s1] sm:$0xf]
        %v207 = vld [vmem:[%s1 + $0x4] sm:$0xf]
        %v208 = vld [vmem:[%s1 + $0x8] sm:$0xf]
        %v209 = vld [vmem:[%s1 + $0xc] sm:$0xf]
        %v210 = vld [vmem:[%s1 + $0x10] sm:$0xf]
        %v211 = vld [vmem:[%s1 + $0x14] sm:$0xf]
        %v212 = vld [vmem:[%s2] sm:$0xf]
        %v213 = vld [vmem:[%s2 + $0x4] sm:$0xf]
        %v214 = vld [vmem:[%s2 + $0x8] sm:$0xf]
        %v215 = vld [vmem:[%s2 + $0xc] sm:$0xf]
        %v216 = vld [vmem:[%s2 + $0x10] sm:$0xf]
        %v217 = vld [vmem:[%s2 + $0x14] sm:$0xf]
        %v218 = vld [vmem:[%s2 + $0x18] sm:$0xf]
        %v219 = vld [vmem:[%s2 + $0x1c] sm:$0xf]
        %v220 = vld [vmem:[%s2 + $0x20] sm:$0xf]
        %v221 = vld [vmem:[%s2 + $0x24] sm:$0xf]
        %v222 = vld [vmem:[%s2 + $0x28] sm:$0xf]
        %v223 = vld [vmem:[%s2 + $0x2c] sm:$0xf]
        %v224 = vld [vmem:[%s2 + $0x30] sm:$0xf]
        %v225 = vld [vmem:[%s2 + $0x34] sm:$0xf]
        %v226 = vld [vmem:[%s2 + $0x38] sm:$0xf]
        %v227 = vld [vmem:[%s2 + $0x3c] sm:$0xf]
        %v234 = vunpack.c.l.b16 %v206
        %v235 = vunpack.c.l.b16 %v207
        %v236 = vunpack.c.l.b16 %v208
        %v237 = vunpack.c.l.b16 %v209
        %v238 = vunpack.c.l.b16 %v210
        %v239 = vunpack.c.l.b16 %v211
        %v240 = vpack.c.b16 %v235, %v234
        %v241 = vpack.c.b16 %v237, %v236
        %v242 = vpack.c.b16 %v239, %v238
        %v262 = vunpack.c.l.b16 %v212
        %v263 = vunpack.c.l.b16 %v213
        %v264 = vunpack.c.l.b16 %v214
        %v265 = vunpack.c.l.b16 %v215
        %v266 = vunpack.c.l.b16 %v216
        %v267 = vunpack.c.l.b16 %v217
        %v268 = vunpack.c.l.b16 %v218
        %v269 = vunpack.c.l.b16 %v219
        %v270 = vunpack.c.l.b16 %v220
        %v271 = vunpack.c.l.b16 %v221
        %v272 = vunpack.c.l.b16 %v222
        %v273 = vunpack.c.l.b16 %v223
        %v274 = vunpack.c.l.b16 %v224
        %v275 = vunpack.c.l.b16 %v225
        %v276 = vunpack.c.l.b16 %v226
        %v277 = vunpack.c.l.b16 %v227
        %v278 = vpack.c.b16 %v263, %v262
        %v279 = vpack.c.b16 %v265, %v264
        %v280 = vpack.c.b16 %v267, %v266
        %v281 = vpack.c.b16 %v269, %v268
        %v282 = vpack.c.b16 %v271, %v270
        %v283 = vpack.c.b16 %v273, %v272
        %v284 = vpack.c.b16 %v275, %v274
        %v285 = vpack.c.b16 %v277, %v276
        %294 = vmatprep.subr.bf16.mxu0 0
        %295 = vmatpush1.bf16.msra.mxu0 %v278
        %296 = vmatprep.subr.bf16.mxu0 0
        %297 = vmatpush1.bf16.msra.mxu0 %v279
        %298 = vmatprep.subr.bf16.mxu0 0
        %299 = vmatpush1.bf16.msra.mxu0 %v280
        %300 = vmatprep.subr.bf16.mxu0 0
        %301 = vmatpush1.bf16.msra.mxu0 %v281
        %302 = vmatprep.subr.bf16.mxu0 0
        %303 = vmatpush1.bf16.msra.mxu0 %v282
        %304 = vmatprep.subr.bf16.mxu0 0
        %305 = vmatpush1.bf16.msra.mxu0 %v283
        %306 = vmatprep.subr.bf16.mxu0 0
        %307 = vmatpush1.bf16.msra.mxu0 %v284
        %308 = vmatprep.subr.bf16.mxu0 0
        %309 = vmatpush1.bf16.msra.mxu0 %v285
        %310 = vmatprep.subr.bf16.mxu0 0
        %311 = vmatpush1.bf16.msra.mxu0 0
        %312 = vmatprep.subr.bf16.mxu0 0
        %313 = vmatpush1.bf16.msra.mxu0 0
        %314 = vmatprep.subr.bf16.mxu0 0
        %315 = vmatpush1.bf16.msra.mxu0 0
        %316 = vmatprep.subr.bf16.mxu0 0
        %317 = vmatpush1.bf16.msra.mxu0 0
        %318 = vmatprep.subr.bf16.mxu0 0
        %319 = vmatpush1.bf16.msra.mxu0 0
        %320 = vmatprep.subr.bf16.mxu0 0
        %321 = vmatpush1.bf16.msra.mxu0 0
        %322 = vmatprep.subr.bf16.mxu0 0
        %323 = vmatpush1.bf16.msra.mxu0 0
        %324 = vmatprep.subr.bf16.mxu0 0
        %325 = vmatpush1.bf16.msra.mxu0 0
        %326 = vmatprep.mubr.bf16.mxu0 0
        %327 = vmatmul.mubr.bf16.gmra.mrb[0].mxu0 %v240
        %v328 = vpop.f32.mrb[0].mxu0
        %v329 = vadd.f32 0.0, %v328
        %v330 = vpop.f32.mrb[0].mxu0
        %v331 = vpop.f32.mrb[0].mxu0
        %v332 = vadd.f32 0.0, %v331
        %v333 = vpop.f32.mrb[0].mxu0
        %334 = vmatprep.mubr.bf16.mxu0 0
        %335 = vmatmul.mubr.bf16.gmra.mrb[0].mxu0 %v241
        %v336 = vpop.f32.mrb[0].mxu0
        %v337 = vadd.f32 0.0, %v336
        %v338 = vpop.f32.mrb[0].mxu0
        %v339 = vpop.f32.mrb[0].mxu0
        %v340 = vadd.f32 0.0, %v339
        %v341 = vpop.f32.mrb[0].mxu0
        %342 = vmatprep.mubr.bf16.mxu0 0
        %343 = vmatmul.mubr.bf16.gmra.mrb[0].mxu0 %v242
        %v344 = vpop.f32.mrb[0].mxu0
        %v345 = vadd.f32 0.0, %v344
        %v346 = vpop.f32.mrb[0].mxu0
        %v347 = vpop.f32.mrb[0].mxu0
        %v348 = vadd.f32 0.0, %v347
        %v349 = vpop.f32.mrb[0].mxu0
        %350 = vdwg.mxu0
        %v351 = vpack.c.bf16 %v332, %v329
        %v352 = vpack.c.bf16 %v340, %v337
        %v353 = vpack.c.bf16 %v348, %v345
        %354 = vst [vmem:[#allocation2] sm:$0xff] %v351
        %355 = vst [vmem:[#allocation2 + $0x8] sm:$0xff] %v352
        %356 = vst [vmem:[#allocation2 + $0x10] sm:$0xff] %v353
      $region40: #{gcn_forward.2} parent=35 // pred_fallthru
        _
      %v357 = vld [vmem:[%s193] sm:$0xf]
      %v358 = vld [vmem:[%s193 + $0x4] sm:$0xf]
      %v359 = vld [vmem:[#allocation2] sm:$0xff]
      %v360 = vld [vmem:[#allocation2 + $0x8] sm:$0xff]
      %v361 = vld [vmem:[#allocation2 + $0x10] sm:$0xff]
      %v362 = vld [vmem:[%s3] sm:$0x1]
      %v364 = vlaneseq
      %v365 = vshrl.u32 %v364, 7
      %v366 = vsub.s32 0, %v365
      %v367 = vrot.slane %v362, %v366
      %v371 = vunpack.c.l.b16 %v357
      %v372 = vunpack.c.l.b16 %v358
      %v373 = vpack.c.b16 %v372, %v371
      %vm374 = vcmask 392192
      %v376 = vsel %vm374, %v373, 0
      %378 = vmatprep.subr.bf16.mxu0 0
      %379 = vmatpush1.bf16.msra.mxu0 %v359
      %380 = vmatprep.subr.bf16.mxu0 0
      %381 = vmatpush1.bf16.msra.mxu0 %v360
      %382 = vmatprep.subr.bf16.mxu0 0
      %383 = vmatpush1.bf16.msra.mxu0 %v361
      %384 = vmatprep.subr.bf16.mxu0 0
      %385 = vmatpush1.bf16.msra.mxu0 0
      %386 = vmatprep.subr.bf16.mxu0 0
      %387 = vmatpush1.bf16.msra.mxu0 0
      %388 = vmatprep.subr.bf16.mxu0 0
      %389 = vmatpush1.bf16.msra.mxu0 0
      %390 = vmatprep.subr.bf16.mxu0 0
      %391 = vmatpush1.bf16.msra.mxu0 0
      %392 = vmatprep.subr.bf16.mxu0 0
      %393 = vmatpush1.bf16.msra.mxu0 0
      %394 = vmatprep.subr.bf16.mxu0 0
      %395 = vmatpush1.bf16.msra.mxu0 0
      %396 = vmatprep.subr.bf16.mxu0 0
      %397 = vmatpush1.bf16.msra.mxu0 0
      %398 = vmatprep.subr.bf16.mxu0 0
      %399 = vmatpush1.bf16.msra.mxu0 0
      %400 = vmatprep.subr.bf16.mxu0 0
      %401 = vmatpush1.bf16.msra.mxu0 0
      %402 = vmatprep.subr.bf16.mxu0 0
      %403 = vmatpush1.bf16.msra.mxu0 0
      %404 = vmatprep.subr.bf16.mxu0 0
      %405 = vmatpush1.bf16.msra.mxu0 0
      %406 = vmatprep.subr.bf16.mxu0 0
      %407 = vmatpush1.bf16.msra.mxu0 0
      %408 = vmatprep.subr.bf16.mxu0 0
      %409 = vmatpush1.bf16.msra.mxu0 0
      %410 = vmatprep.mubr.bf16.mxu0 0
      %411 = vmatmul.mubr.bf16.gmra.mrb[0].mxu0 %v376
      %v412 = vpop.f32.mrb[0].mxu0
      %v413 = vadd.f32 %v367, %v412
      %v414 = vpop.f32.mrb[0].mxu0
      %v415 = vpop.f32.mrb[0].mxu0
      %v416 = vadd.f32 %v367, %v415
      %v417 = vpop.f32.mrb[0].mxu0
      %418 = vdwg.mxu0
      %v419 = vmax.f32 %v413, 0.0
      %v420 = vmax.f32 %v416, 0.0
      %v421 = vpack.c.bf16 %v420, %v419
      %v423 = vunpack.c.l.b16 %v421
      %v424 = vunpack.c.h.b16 %v421
      %v425 = vpack.c.b16 %v423, %v423
      %v426 = vpack.c.b16 %v424, %v424
      %429 = vst [vmem:[%s199] sm:$0xf] %v425
      %430 = vst [vmem:[%s199 + $0x4] sm:$0xf] %v426
      %s431 = smul.u32 2, %s15
      %p432 = scmp.lt.s32.totalorder %s431, 5
      %s433 = scalar_select %p432, %s431, 5
      %s434 = smul.addr %s433, 4
      %s435 = scalar_lea.vmem %s4, %s434
      // Predicated region
      $region41: #{gcn_forward.2} parent=35 // pred_check
        %p436 = pneg %p122
      $region42: #{gcn_forward.2} parent=35 // pred_check_branch
        %438 = sbr.rel (%p436) target = $region44
      $region43: #{gcn_forward.2} parent=35 // pred_region
        %s439 = smul.u32 2, %s15
      $region44: #{gcn_forward.2} parent=35 // pred_fallthru
        _
    $region36: #{gcn_forward.2} parent=5 // pred_fallthru
      _
    %p440 = scmp.le.s32.totalorder 2, %s10
    // Predicated region
    $region45: #{gcn_forward.2} parent=5 // pred_check
      %p441 = pneg %p440
    $region46: #{gcn_forward.2} parent=5 // pred_check_branch
      %443 = sbr.rel (%p441) target = $region48
    $region47: #{gcn_forward.2} parent=5 // pred_region
      %s444 = ssub.s32 %s10, 2
      // Predicated region
      $region49: #{gcn_forward.2} parent=47 // pred_check
        %p445 = pneg %p128
      $region50: #{gcn_forward.2} parent=47 // pred_check_branch
        %447 = sbr.rel (%p445) target = $region52
      $region51: #{gcn_forward.2} parent=47 // pred_region
        %s448 = smul.u32 2, %s16
        %p449 = scmp.lt.s32.totalorder %s448, 5
        %s450 = scalar_select %p449, %s448, 5
        %s451 = smul.addr %s450, 4
        %s452 = scalar_lea.vmem %s4, %s451
      $region52: #{gcn_forward.2} parent=47 // pred_fallthru
        _
    $region48: #{gcn_forward.2} parent=5 // pred_fallthru
      _
  $region6: #{gcn_forward.2} parent=0 // loop_footer
    %s14 = sadd.s32 1, %s10
  $region7: #{gcn_forward.2} parent=0 // loop_footer_branch
    %9 = sbr.rel target = $region3
  $region8: #{gcn_forward.2} parent=0 // loop_exit
    _

</llo_original>
